<compile_context>
chip_gen: v6e
topology: v6e:2x2x1
jax: 0.10.0
libtpu: 0.0.40
codegen_flags: <defaults>
</compile_context>

<pallas_src>
import jax
import jax.numpy as jnp
from jax.experimental import pallas as pl
from jax.experimental.pallas import tpu as pltpu

C_IN = 3
C_OUT = 64


def _spatial_descriptor_kernel(w_ref, b_ref, x_ref, o_ref):
    # w_ref: (64, 3), b_ref: (64, 1), x_ref: (3, TN), o_ref: (64, TN)
    x = x_ref[...]
    w = w_ref[...]
    b = b_ref[...]
    # K = 3 contraction as 3 broadcasted FMAs on the VPU (memory-bound kernel;
    # MXU push/pop buys nothing here).
    y = (w[:, 0:1] * x[0:1, :]
         + w[:, 1:2] * x[1:2, :]
         + w[:, 2:3] * x[2:3, :]
         + b)                                     # bias broadcast over points
    o_ref[...] = jnp.maximum(y, 0.0).astype(o_ref.dtype)


def _select_tn(N, B, tn_max=16384):
    """Pick the point-axis tile size.

    Returns tn such that either tn == N (full-dim block, zero masking) or
    tn % 128 == 0 and tn <= N (legal lane-aligned block; the ragged trailing
    block is masked by Pallas on store).
    """
    if N <= 256:
        return N                                   # one tiny block per batch
    nb = pl.cdiv(N, tn_max)                        # tiles needed under the cap
    # v7x: the two TensorCores share 3.2 TB/s HBM and this kernel is pure
    # bandwidth, so a small odd step count loses up to ~33% to imbalance.
    if (B * nb) % 2 == 1 and (B * nb) < 8:
        nb += 1
    if nb == 1:
        return N                                   # whole N per step, no masking
    tn = pl.cdiv(pl.cdiv(N, nb), 128) * 128        # 128-aligned tile
    return min(tn, (N // 128) * 128)               # block must not exceed N


def spatial_descriptor(center, weight, bias, *, tn_max=16384):
    """center: (B, 3, N) f32, weight: (64, 3) f32, bias: (64,) f32 -> (B, 64, N) f32."""
    B, C, N = center.shape
    assert C == C_IN

    tn = _select_tn(N, B, tn_max)
    n_blocks = pl.cdiv(N, tn)
    bias2d = bias.reshape(C_OUT, 1)

    flops = 2 * B * C_IN * C_OUT * N
    bytes_accessed = 4 * (B * C_IN * N + B * C_OUT * N + C_OUT * C_IN + C_OUT)

    out = pl.pallas_call(
        _spatial_descriptor_kernel,
        out_shape=jax.ShapeDtypeStruct((B, C_OUT, N), center.dtype),
        grid_spec=pltpu.PrefetchScalarGridSpec(
            num_scalar_prefetch=0,
            grid=(B, n_blocks),
            in_specs=[
                pl.BlockSpec((C_OUT, C_IN), lambda b, j: (0, 0)),   # weight (resident)
                pl.BlockSpec((C_OUT, 1), lambda b, j: (0, 0)),      # bias (resident)
                pl.BlockSpec((pl.Squeezed(), C_IN, tn), lambda b, j: (b, 0, j)),
            ],
            out_specs=pl.BlockSpec((pl.Squeezed(), C_OUT, tn),
                                   lambda b, j: (b, 0, j)),
        ),
        compiler_params=pltpu.CompilerParams(
            dimension_semantics=("parallel", "parallel"),
        ),
        cost_estimate=pl.CostEstimate(
            flops=flops, transcendentals=0, bytes_accessed=bytes_accessed),
    )(weight, bias2d, center)

    return out


def spatial_descriptor_ref(center, weight, bias):
    # Pure-JAX reference of the PyTorch forward (Conv1d k=1 + ReLU).
    y = jnp.einsum("oc,bcn->bon", weight, center) + bias[None, :, None]
    return jnp.maximum(y, 0.0)


if __name__ == "__main__":
    key = jax.random.PRNGKey(0)
    k_x, k_w, k_b = jax.random.split(key, 3)

    # Deterministic parameter init (mimics Conv1d(3, 64, 1) shapes).
    weight = jax.random.normal(k_w, (C_OUT, C_IN), dtype=jnp.float32) * 0.1
    bias = jax.random.normal(k_b, (C_OUT,), dtype=jnp.float32) * 0.1

    # Case 1: B=2, ragged N -> one full-dim (64, 300) block per batch,
    # grid (2, 1), no padding and no masking anywhere.
    B, N = 2, 300
    center = jax.random.normal(k_x, (B, C_IN, N), dtype=jnp.float32)
    out = jax.block_until_ready(spatial_descriptor(center, weight, bias))
    ref = spatial_descriptor_ref(center, weight, bias)
    assert out.shape == (B, C_OUT, N)
    assert jnp.allclose(out, ref, atol=1e-5, rtol=1e-5)

    # Case 2: B=1 triggers the dual-TC split -> 128-aligned tiles (tn=256)
    # with a masked ragged trailing block (44 valid columns).
    center1 = center[:1]
    out1 = jax.block_until_ready(spatial_descriptor(center1, weight, bias))
    ref1 = spatial_descriptor_ref(center1, weight, bias)
    assert out1.shape == (1, C_OUT, N)
    assert jnp.allclose(out1, ref1, atol=1e-5, rtol=1e-5)

    print("KERNEL_OK")
</pallas_src>

<mosaic_0001>
module attributes {stable_mosaic.version = 11 : i64} {
  func.func @_spatial_descriptor_kernel(%arg0: i32, %arg1: i32, %arg2: memref<64x3xf32, #tpu.memory_space<vmem>>, %arg3: memref<64x1xf32, #tpu.memory_space<vmem>>, %arg4: memref<1x3x300xf32, #tpu.memory_space<vmem>>, %arg5: memref<1x64x300xf32, #tpu.memory_space<vmem>>) attributes {dimension_semantics = [#tpu.dimension_semantics<parallel>, #tpu.dimension_semantics<parallel>], iteration_bounds = array<i64: 2, 1>, scalar_prefetch = 0 : i64, scratch_operands = 0 : i64, tpu.core_type = #tpu.core_type<tc>, window_params = [{pipeline_mode = #tpu.pipeline_mode<synchronous>, transform_indices = @transform_0, window_bounds = array<i64: 64, 3>}, {pipeline_mode = #tpu.pipeline_mode<synchronous>, transform_indices = @transform_1, window_bounds = array<i64: 64, 1>}, {transform_indices = @transform_2, window_bounds = array<i64: 1, 3, 300>}, {transform_indices = @transform_3, window_bounds = array<i64: 1, 64, 300>}]} {
    %c0 = arith.constant 0 : index
    %c0_0 = arith.constant 0 : index
    %c0_1 = arith.constant 0 : index
    %0 = vector.load %arg4[%c0, %c0_0, %c0_1] : memref<1x3x300xf32, #tpu.memory_space<vmem>>, vector<1x3x300xf32>
    %1 = vector.shape_cast %0 : vector<1x3x300xf32> to vector<3x300xf32>
    %c0_2 = arith.constant 0 : index
    %c0_3 = arith.constant 0 : index
    %2 = vector.load %arg2[%c0_2, %c0_3] : memref<64x3xf32, #tpu.memory_space<vmem>>, vector<64x3xf32>
    %c0_4 = arith.constant 0 : index
    %c0_5 = arith.constant 0 : index
    %3 = vector.load %arg3[%c0_4, %c0_5] : memref<64x1xf32, #tpu.memory_space<vmem>>, vector<64x1xf32>
    %4 = vector.extract_strided_slice %2 {offsets = [0, 0], sizes = [64, 1], strides = [1, 1]} : vector<64x3xf32> to vector<64x1xf32>
    %5 = vector.extract_strided_slice %1 {offsets = [0, 0], sizes = [1, 300], strides = [1, 1]} : vector<3x300xf32> to vector<1x300xf32>
    %6 = vector.broadcast %4 : vector<64x1xf32> to vector<64x300xf32>
    %7 = vector.broadcast %5 : vector<1x300xf32> to vector<64x300xf32>
    %8 = arith.mulf %6, %7 : vector<64x300xf32>
    %9 = vector.extract_strided_slice %2 {offsets = [0, 1], sizes = [64, 1], strides = [1, 1]} : vector<64x3xf32> to vector<64x1xf32>
    %10 = vector.extract_strided_slice %1 {offsets = [1, 0], sizes = [1, 300], strides = [1, 1]} : vector<3x300xf32> to vector<1x300xf32>
    %11 = vector.broadcast %9 : vector<64x1xf32> to vector<64x300xf32>
    %12 = vector.broadcast %10 : vector<1x300xf32> to vector<64x300xf32>
    %13 = arith.mulf %11, %12 : vector<64x300xf32>
    %14 = arith.addf %8, %13 : vector<64x300xf32>
    %15 = vector.extract_strided_slice %2 {offsets = [0, 2], sizes = [64, 1], strides = [1, 1]} : vector<64x3xf32> to vector<64x1xf32>
    %16 = vector.extract_strided_slice %1 {offsets = [2, 0], sizes = [1, 300], strides = [1, 1]} : vector<3x300xf32> to vector<1x300xf32>
    %17 = vector.broadcast %15 : vector<64x1xf32> to vector<64x300xf32>
    %18 = vector.broadcast %16 : vector<1x300xf32> to vector<64x300xf32>
    %19 = arith.mulf %17, %18 : vector<64x300xf32>
    %20 = arith.addf %14, %19 : vector<64x300xf32>
    %21 = vector.broadcast %3 : vector<64x1xf32> to vector<64x300xf32>
    %22 = arith.addf %20, %21 : vector<64x300xf32>
    %cst = arith.constant 0.000000e+00 : f32
    %23 = vector.broadcast %cst : f32 to vector<64x300xf32>
    %24 = arith.maximumf %22, %23 : vector<64x300xf32>
    %c0_6 = arith.constant 0 : index
    %c0_7 = arith.constant 0 : index
    %c0_8 = arith.constant 0 : index
    %25 = vector.load %arg5[%c0_6, %c0_7, %c0_8] : memref<1x64x300xf32, #tpu.memory_space<vmem>>, vector<1x64x300xf32>
    %26 = vector.shape_cast %25 : vector<1x64x300xf32> to vector<64x300xf32>
    %27 = vector.shape_cast %24 : vector<64x300xf32> to vector<1x64x300xf32>
    tpu.vector_store %arg5[%c0_6, %c0_7, %c0_8], %27 {strides = array<i32>} : memref<1x64x300xf32, #tpu.memory_space<vmem>>, vector<1x64x300xf32>,
    return
  }
  func.func @transform_0(%arg0: i32, %arg1: i32) -> (i32, i32) {
    %c0_i32 = arith.constant 0 : i32
    %c0_i32_0 = arith.constant 0 : i32
    %c0_i32_1 = arith.constant 0 : i32
    return %c0_i32, %c0_i32_0 : i32, i32
  }
  func.func @transform_1(%arg0: i32, %arg1: i32) -> (i32, i32) {
    %c0_i32 = arith.constant 0 : i32
    %c0_i32_0 = arith.constant 0 : i32
    %c0_i32_1 = arith.constant 0 : i32
    return %c0_i32, %c0_i32_0 : i32, i32
  }
  func.func @transform_2(%arg0: i32, %arg1: i32) -> (i32, i32, i32) {
    %c0_i32 = arith.constant 0 : i32
    %c0_i32_0 = arith.constant 0 : i32
    return %arg0, %c0_i32, %arg1 : i32, i32, i32
  }
  func.func @transform_3(%arg0: i32, %arg1: i32) -> (i32, i32, i32) {
    %c0_i32 = arith.constant 0 : i32
    %c0_i32_0 = arith.constant 0 : i32
    return %arg0, %c0_i32, %arg1 : i32, i32, i32
  }
}

</mosaic_0001>

<llo_original>
// kernel: tpu_custom_call.1
$region0: #{tpu_custom_call.1}
  #allocation0 [shape = 'u32[]', space=smem, size = 0x4, offset = 0x4, fixed_abs, tag = 'smem constant byte address 0x4 - core index']
  #allocation1 [shape = 'u32[144,128]{1,0:T(1,128)}', space=vmem, size = 0x12000, scoped, tag = 'internal scratch']
  %s0 = inlined_call_operand.vmem [shape: f32[64,3], index: 0, kind: input, shape index: {}]
  %s1 = inlined_call_operand.vmem [shape: f32[64,1], index: 1, kind: input, shape index: {}]
  %s2 = inlined_call_operand.vmem [shape: f32[2,3,300], index: 2, kind: input, shape index: {}]
  %s3 = inlined_call_operand.hbm [shape: f32[2,64,300], index: 3, kind: output, shape index: {}]
  %s4 = sld [smem:[#allocation0]]
  $region45: #{tpu_custom_call.1} parent=0
    _
  %s6 = ssub.s32 1, %s4
  %s7 = scalar_select 0, %s6, %s4
  $region1: #{tpu_custom_call.1} parent=0
    #allocation2 [shape = 'u8[196608]{0}', space=vmem, size = 0x30000, scoped, tag = 'output window, operand 0']
    #allocation3 [shape = 's32[2]{0}', space=sflag, size = 0x8, scoped, tag = 'scoped memory for tpu_custom_call.1']
    %8 = vsyncpa [#allocation3], 0
    %s9 = scalar_lea.sflag [#allocation3], 1
    %10 = vsyncpa %s9, 0
    loop: start=0, step=1, limit=4
    $region2: #{tpu_custom_call.1} parent=1 // loop_pre_header
      _
    $region3: #{tpu_custom_call.1} parent=1 // loop_header
      %s12 = sphi 0, %s16
      %p13 = scmp.ge.s32.totalorder %s12, 4
      %s19 = sphi 0, %s31
      %s20 = sphi 0, %s27
      %s21 = sphi 0, %s19
      %s22 = sphi 0, %s20
      %s23 = sphi 0, %s21
      %s24 = sphi 0, %s22
      %s32 = sphi 0, %s32
      %s34 = sphi 0, %s32
      %s35 = sphi 0, %s34
      %s49 = sphi 0, %s35
      %s53 = sphi 0, %s53
      %s55 = sphi 0, %s53
      %s56 = sphi 0, %s55
      %s70 = sphi 0, %s56
      %s78 = sphi 0, %s80
      %s81 = sphi 0, %s78
      %s82 = sphi 0, %s81
      %s98 = sphi 0, %s82
      %s106 = sphi 0, %s108
      %s109 = sphi 0, %s106
      %s110 = sphi 0, %s109
      %s126 = sphi 0, %s110
    $region4: #{tpu_custom_call.1} parent=1 // loop_header_branch
      %15 = sbr.rel (%p13) target = $region8
    $region5: #{tpu_custom_call.1} parent=1 // loop_body
      %s17 = ssub.s32 %s12, 1
      %s18 = ssub.s32 %s12, 2
      %s25 = sadd.s32 1, %s20
      %p26 = scmp.ge.s32.totalorder %s25, 1
      %s27 = scalar_select %p26, 0, %s25
      %s28 = sadd.s32 1, %s19
      %s29 = scalar_select %p26, %s28, %s19
      %p30 = scmp.ge.s32.totalorder %s29, 2
      %s31 = scalar_select %p30, 0, %s29
      %s33 = sadd.s32 %s32, 1
      %p36 = scmp.eq.s32.totalorder %s12, 1
      %p37 = scmp.ne.s32.totalorder %s32, %s34
      %p38 = scmp.eq.s32.totalorder %s12, 0
      %p39 = por %p37, %p38
      %p40 = scmp.ne.s32.totalorder %s32, %s34
      %p41 = scmp.eq.s32.totalorder %s17, 1
      %p42 = por %p40, %p41
      %p43 = scmp.ne.s32.totalorder %s34, %s35
      %p44 = scmp.eq.s32.totalorder %s17, 0
      %p45 = por %p43, %p44
      %p46 = scmp.ne.s32.totalorder %s34, %s35
      %p47 = scmp.eq.s32.totalorder %s18, 1
      %p48 = por %p46, %p47
      %p50 = scmp.ne.s32.totalorder %s35, %s49
      %p51 = scmp.eq.s32.totalorder %s18, 0
      %p52 = por %p50, %p51
      %s54 = sadd.s32 %s53, 1
      %p57 = scmp.eq.s32.totalorder %s12, 1
      %p58 = scmp.ne.s32.totalorder %s53, %s55
      %p59 = scmp.eq.s32.totalorder %s12, 0
      %p60 = por %p58, %p59
      %p61 = scmp.ne.s32.totalorder %s53, %s55
      %p62 = scmp.eq.s32.totalorder %s17, 1
      %p63 = por %p61, %p62
      %p64 = scmp.ne.s32.totalorder %s55, %s56
      %p65 = scmp.eq.s32.totalorder %s17, 0
      %p66 = por %p64, %p65
      %p67 = scmp.ne.s32.totalorder %s55, %s56
      %p68 = scmp.eq.s32.totalorder %s18, 1
      %p69 = por %p67, %p68
      %p71 = scmp.ne.s32.totalorder %s56, %s70
      %p72 = scmp.eq.s32.totalorder %s18, 0
      %p73 = por %p71, %p72
      %s74 = ssub.s32 %s19, %s31
      %s75 = ssub.s32 %s20, %s27
      %s76 = sor.u32 %s74, %s75
      %p77 = scmp.eq.s32.totalorder %s76, 0
      %s79 = sadd.s32 %s78, 1
      %s80 = scalar_select %p77, %s78, %s79
      %p83 = pneg %p77
      %p84 = scmp.eq.s32.totalorder %s12, 1
      %p85 = por %p83, %p84
      %p86 = scmp.ne.s32.totalorder %s78, %s81
      %p87 = scmp.eq.s32.totalorder %s12, 0
      %p88 = por %p86, %p87
      %p89 = scmp.ne.s32.totalorder %s78, %s81
      %p90 = scmp.eq.s32.totalorder %s17, 1
      %p91 = por %p89, %p90
      %p92 = scmp.ne.s32.totalorder %s81, %s82
      %p93 = scmp.eq.s32.totalorder %s17, 0
      %p94 = por %p92, %p93
      %p95 = scmp.ne.s32.totalorder %s81, %s82
      %p96 = scmp.eq.s32.totalorder %s18, 1
      %p97 = por %p95, %p96
      %p99 = scmp.ne.s32.totalorder %s82, %s98
      %p100 = scmp.eq.s32.totalorder %s18, 0
      %p101 = por %p99, %p100
      %s102 = ssub.s32 %s19, %s31
      %s103 = ssub.s32 %s20, %s27
      %s104 = sor.u32 %s102, %s103
      %p105 = scmp.eq.s32.totalorder %s104, 0
      %s107 = sadd.s32 %s106, 1
      %s108 = scalar_select %p105, %s106, %s107
      %p111 = pneg %p105
      %p112 = scmp.eq.s32.totalorder %s12, 1
      %p113 = por %p111, %p112
      %p114 = scmp.ne.s32.totalorder %s106, %s109
      %p115 = scmp.eq.s32.totalorder %s12, 0
      %p116 = por %p114, %p115
      %p117 = scmp.ne.s32.totalorder %s106, %s109
      %p118 = scmp.eq.s32.totalorder %s17, 1
      %p119 = por %p117, %p118
      %p120 = scmp.ne.s32.totalorder %s109, %s110
      %p121 = scmp.eq.s32.totalorder %s17, 0
      %p122 = por %p120, %p121
      %p123 = scmp.ne.s32.totalorder %s109, %s110
      %p124 = scmp.eq.s32.totalorder %s18, 1
      %p125 = por %p123, %p124
      %p127 = scmp.ne.s32.totalorder %s110, %s126
      %p128 = scmp.eq.s32.totalorder %s18, 0
      %p129 = por %p127, %p128
      %p130 = scmp.le.s32.totalorder 1, %s12
      %p131 = scmp.lt.s32.totalorder %s12, 3
      %p132 = pnand %p130, %p131
      %p133 = pneg %p132
      // Predicated region
      $region9: #{tpu_custom_call.1} parent=5 // pred_check
        _
      $region10: #{tpu_custom_call.1} parent=5 // pred_check_branch
        %135 = sbr.rel (%p132) target = $region12
      $region11: #{tpu_custom_call.1} parent=5 // pred_region
        %s136 = ssub.s32 %s12, 1
        // Predicated region
        $region13: #{tpu_custom_call.1} parent=11 // pred_check
          %p137 = pneg %p45
        $region14: #{tpu_custom_call.1} parent=11 // pred_check_branch
          %139 = sbr.rel (%p137) target = $region16
        $region15: #{tpu_custom_call.1} parent=11 // pred_region
          _
        $region16: #{tpu_custom_call.1} parent=11 // pred_fallthru
          _
        // Predicated region
        $region17: #{tpu_custom_call.1} parent=11 // pred_check
          %p140 = pneg %p66
        $region18: #{tpu_custom_call.1} parent=11 // pred_check_branch
          %142 = sbr.rel (%p140) target = $region20
        $region19: #{tpu_custom_call.1} parent=11 // pred_region
          _
        $region20: #{tpu_custom_call.1} parent=11 // pred_fallthru
          _
      $region12: #{tpu_custom_call.1} parent=5 // pred_fallthru
        _
      %p143 = scmp.lt.s32.totalorder %s12, 2
      // Predicated region
      $region21: #{tpu_custom_call.1} parent=5 // pred_check
        %p144 = pneg %p143
      $region22: #{tpu_custom_call.1} parent=5 // pred_check_branch
        %146 = sbr.rel (%p144) target = $region24
      $region23: #{tpu_custom_call.1} parent=5 // pred_region
        // Predicated region
        $region25: #{tpu_custom_call.1} parent=23 // pred_check
          %p147 = pneg %p88
        $region26: #{tpu_custom_call.1} parent=23 // pred_check_branch
          %149 = sbr.rel (%p147) target = $region28
        $region27: #{tpu_custom_call.1} parent=23 // pred_region
          %s150 = smul.u32 3, %s20
          %p151 = scmp.lt.s32.totalorder %s19, 1
          %s152 = scalar_select %p151, %s19, 1
          %p153 = scmp.lt.s32.totalorder %s150, 2
          %s154 = scalar_select %p153, %s150, 2
          %s155 = smul.addr %s152, 3
          %s156 = sadd.s32 %s154, %s155
          %s157 = smul.addr %s156, 4
          %s158 = scalar_lea.vmem %s2, %s157
          %s159 = smul.u32 3, %s20
        $region28: #{tpu_custom_call.1} parent=23 // pred_fallthru
          _
      $region24: #{tpu_custom_call.1} parent=5 // pred_fallthru
        _
      %p160 = scmp.le.s32.totalorder 1, %s12
      %p161 = scmp.lt.s32.totalorder %s12, 3
      %p162 = pnand %p160, %p161
      %p163 = pneg %p162
      // Predicated region
      $region29: #{tpu_custom_call.1} parent=5 // pred_check
        _
      $region30: #{tpu_custom_call.1} parent=5 // pred_check_branch
        %165 = sbr.rel (%p162) target = $region32
      $region31: #{tpu_custom_call.1} parent=5 // pred_region
        %s166 = ssub.s32 %s12, 1
        %p167 = pneg %p45
        %p168 = pneg %p42
        %p169 = pneg %p66
        %p170 = pneg %p63
        %s171 = smul.u32 3, %s22
        %p172 = scmp.lt.s32.totalorder %s21, 1
        %s173 = scalar_select %p172, %s21, 1
        %p174 = scmp.lt.s32.totalorder %s171, 2
        %s175 = scalar_select %p174, %s171, 2
        %s176 = smul.addr %s173, 3
        %s177 = sadd.s32 %s175, %s176
        %s178 = smul.addr %s177, 4
        %s179 = scalar_lea.vmem %s2, %s178
        %p180 = pneg %p94
        %p181 = pneg %p91
        %p182 = pneg %p122
        %p183 = pneg %p119
        %s184 = sand.u32 %s109, 1
        %s185 = scalar_lea.sflag [#allocation3], %s184
        %s186 = sand.u32 %s109, 1
        %s187 = smul.addr %s186, 192
        %s188 = scalar_lea.vmem [#allocation2], %s187
        %s189 = smul.u32 3, %s22
        %p190 = scmp.lt.s32.totalorder %s21, 1
        %s191 = scalar_select %p190, %s21, 1
        %p192 = scmp.lt.s32.totalorder %s189, 2
        %s193 = scalar_select %p192, %s189, 2
        %s194 = smul.addr %s191, 3
        %s195 = sadd.s32 %s193, %s194
        %s196 = smul.addr %s195, 4
        %s197 = scalar_lea.vmem %s2, %s196
        %s198 = smul.u32 3, %s22
        %s199 = smul.u32 3, %s22
        %v200 = vld [vmem:[%s197] sm:$0x77]
        %v201 = vld [vmem:[%s197 + $0x8] sm:$0x7]
        %v202 = vld [vmem:[%s0] sm:$0xff]
        %v203 = vld [vmem:[%s0 + $0x8] sm:$0xff]
        %v204 = vld [vmem:[%s0 + $0x10] sm:$0xff]
        %v205 = vld [vmem:[%s0 + $0x18] sm:$0xff]
        %v206 = vld [vmem:[%s0 + $0x20] sm:$0xff]
        %v207 = vld [vmem:[%s0 + $0x28] sm:$0xff]
        %v208 = vld [vmem:[%s0 + $0x30] sm:$0xff]
        %v209 = vld [vmem:[%s0 + $0x38] sm:$0xff]
        %v210 = vld [vmem:[%s1] sm:$0xff]
        %v211 = vld [vmem:[%s1 + $0x8] sm:$0xff]
        %v212 = vld [vmem:[%s1 + $0x10] sm:$0xff]
        %v213 = vld [vmem:[%s1 + $0x18] sm:$0xff]
        %v214 = vld [vmem:[%s1 + $0x20] sm:$0xff]
        %v215 = vld [vmem:[%s1 + $0x28] sm:$0xff]
        %v216 = vld [vmem:[%s1 + $0x30] sm:$0xff]
        %v217 = vld [vmem:[%s1 + $0x38] sm:$0xff]
        %219 = vset.pattern.permute.xlu0 0
        %220 = vperm.xlu0 %219, %v202
        %v221 = vpop.permute.xlu0 %220
        %224 = vset.pattern.permute.xlu0 0
        %225 = vperm.xlu0 %224, %v203
        %v226 = vpop.permute.xlu0 %225
        %229 = vset.pattern.permute.xlu0 0
        %230 = vperm.xlu0 %229, %v204
        %v231 = vpop.permute.xlu0 %230
        %234 = vset.pattern.permute.xlu0 0
        %235 = vperm.xlu0 %234, %v205
        %v236 = vpop.permute.xlu0 %235
        %239 = vset.pattern.permute.xlu0 0
        %240 = vperm.xlu0 %239, %v206
        %v241 = vpop.permute.xlu0 %240
        %244 = vset.pattern.permute.xlu0 0
        %245 = vperm.xlu0 %244, %v207
        %v246 = vpop.permute.xlu0 %245
        %249 = vset.pattern.permute.xlu0 0
        %250 = vperm.xlu0 %249, %v208
        %v251 = vpop.permute.xlu0 %250
        %254 = vset.pattern.permute.xlu0 0
        %255 = vperm.xlu0 %254, %v209
        %v256 = vpop.permute.xlu0 %255
        %v260 = vlaneseq
        %v261 = vshrl.u32 %v260, 7
        %v262 = vsub.s32 0, %v261
        %v263 = vrot.slane %v200, %v262
        %v264 = vlaneseq
        %v265 = vshrl.u32 %v264, 7
        %v266 = vsub.s32 4, %v265
        %v267 = vrot.slane %v200, %v266
        %v268 = vlaneseq
        %v269 = vshrl.u32 %v268, 7
        %v270 = vsub.s32 0, %v269
        %v271 = vrot.slane %v201, %v270
        %v275 = vlaneseq
        %v276 = vshrl.u32 %v275, 7
        %v277 = vsub.s32 0, %v276
        %v278 = vrot.slane %v263, %v277
        %v279 = vlaneseq
        %v280 = vshrl.u32 %v279, 7
        %v281 = vsub.s32 0, %v280
        %v282 = vrot.slane %v267, %v281
        %v283 = vlaneseq
        %v284 = vshrl.u32 %v283, 7
        %v285 = vsub.s32 0, %v284
        %v286 = vrot.slane %v271, %v285
        %v287 = vmul.f32 %v221, %v278
        %v288 = vmul.f32 %v221, %v282
        %v289 = vmul.f32 %v221, %v286
        %v290 = vmul.f32 %v226, %v278
        %v291 = vmul.f32 %v226, %v282
        %v292 = vmul.f32 %v226, %v286
        %v293 = vmul.f32 %v231, %v278
        %v294 = vmul.f32 %v231, %v282
        %v295 = vmul.f32 %v231, %v286
        %v296 = vmul.f32 %v236, %v278
        %v297 = vmul.f32 %v236, %v282
        %v298 = vmul.f32 %v236, %v286
        %v299 = vmul.f32 %v241, %v278
        %v300 = vmul.f32 %v241, %v282
        %v301 = vmul.f32 %v241, %v286
        %v302 = vmul.f32 %v246, %v278
        %v303 = vmul.f32 %v246, %v282
        %v304 = vmul.f32 %v246, %v286
        %v305 = vmul.f32 %v251, %v278
        %v306 = vmul.f32 %v251, %v282
        %v307 = vmul.f32 %v251, %v286
        %v308 = vmul.f32 %v256, %v278
        %v309 = vmul.f32 %v256, %v282
        %v310 = vmul.f32 %v256, %v286
        %311 = vset.pattern.permute.xlu0 1
        %312 = vperm.xlu0 %311, %v202
        %v313 = vpop.permute.xlu0 %312
        %315 = vset.pattern.permute.xlu0 1
        %316 = vperm.xlu0 %315, %v203
        %v317 = vpop.permute.xlu0 %316
        %319 = vset.pattern.permute.xlu0 1
        %320 = vperm.xlu0 %319, %v204
        %v321 = vpop.permute.xlu0 %320
        %323 = vset.pattern.permute.xlu0 1
        %324 = vperm.xlu0 %323, %v205
        %v325 = vpop.permute.xlu0 %324
        %327 = vset.pattern.permute.xlu0 1
        %328 = vperm.xlu0 %327, %v206
        %v329 = vpop.permute.xlu0 %328
        %331 = vset.pattern.permute.xlu0 1
        %332 = vperm.xlu0 %331, %v207
        %v333 = vpop.permute.xlu0 %332
        %335 = vset.pattern.permute.xlu0 1
        %336 = vperm.xlu0 %335, %v208
        %v337 = vpop.permute.xlu0 %336
        %339 = vset.pattern.permute.xlu0 1
        %340 = vperm.xlu0 %339, %v209
        %v341 = vpop.permute.xlu0 %340
        %v343 = vlaneseq
        %v344 = vshrl.u32 %v343, 7
        %v345 = vsub.s32 1, %v344
        %v346 = vrot.slane %v200, %v345
        %v347 = vlaneseq
        %v348 = vshrl.u32 %v347, 7
        %v349 = vsub.s32 5, %v348
        %v350 = vrot.slane %v200, %v349
        %v351 = vlaneseq
        %v352 = vshrl.u32 %v351, 7
        %v353 = vsub.s32 1, %v352
        %v354 = vrot.slane %v201, %v353
        %v358 = vlaneseq
        %v359 = vshrl.u32 %v358, 7
        %v360 = vsub.s32 1, %v359
        %v361 = vrot.slane %v346, %v360
        %v362 = vlaneseq
        %v363 = vshrl.u32 %v362, 7
        %v364 = vsub.s32 1, %v363
        %v365 = vrot.slane %v350, %v364
        %v366 = vlaneseq
        %v367 = vshrl.u32 %v366, 7
        %v368 = vsub.s32 1, %v367
        %v369 = vrot.slane %v354, %v368
        %v370 = vmul.f32 %v313, %v361
        %v371 = vmul.f32 %v313, %v365
        %v372 = vmul.f32 %v313, %v369
        %v373 = vmul.f32 %v317, %v361
        %v374 = vmul.f32 %v317, %v365
        %v375 = vmul.f32 %v317, %v369
        %v376 = vmul.f32 %v321, %v361
        %v377 = vmul.f32 %v321, %v365
        %v378 = vmul.f32 %v321, %v369
        %v379 = vmul.f32 %v325, %v361
        %v380 = vmul.f32 %v325, %v365
        %v381 = vmul.f32 %v325, %v369
        %v382 = vmul.f32 %v329, %v361
        %v383 = vmul.f32 %v329, %v365
        %v384 = vmul.f32 %v329, %v369
        %v385 = vmul.f32 %v333, %v361
        %v386 = vmul.f32 %v333, %v365
        %v387 = vmul.f32 %v333, %v369
        %v388 = vmul.f32 %v337, %v361
        %v389 = vmul.f32 %v337, %v365
        %v390 = vmul.f32 %v337, %v369
        %v391 = vmul.f32 %v341, %v361
        %v392 = vmul.f32 %v341, %v365
        %v393 = vmul.f32 %v341, %v369
        %v394 = vadd.f32 %v287, %v370
        %v395 = vadd.f32 %v288, %v371
        %v396 = vadd.f32 %v289, %v372
        %v397 = vadd.f32 %v290, %v373
        %v398 = vadd.f32 %v291, %v374
        %v399 = vadd.f32 %v292, %v375
        %v400 = vadd.f32 %v293, %v376
        %v401 = vadd.f32 %v294, %v377
        %v402 = vadd.f32 %v295, %v378
        %v403 = vadd.f32 %v296, %v379
        %v404 = vadd.f32 %v297, %v380
        %v405 = vadd.f32 %v298, %v381
        %v406 = vadd.f32 %v299, %v382
        %v407 = vadd.f32 %v300, %v383
        %v408 = vadd.f32 %v301, %v384
        %v409 = vadd.f32 %v302, %v385
        %v410 = vadd.f32 %v303, %v386
        %v411 = vadd.f32 %v304, %v387
        %v412 = vadd.f32 %v305, %v388
        %v413 = vadd.f32 %v306, %v389
        %v414 = vadd.f32 %v307, %v390
        %v415 = vadd.f32 %v308, %v391
        %v416 = vadd.f32 %v309, %v392
        %v417 = vadd.f32 %v310, %v393
        %418 = vset.pattern.permute.xlu0 2
        %419 = vperm.xlu0 %418, %v202
        %v420 = vpop.permute.xlu0 %419
        %422 = vset.pattern.permute.xlu0 2
        %423 = vperm.xlu0 %422, %v203
        %v424 = vpop.permute.xlu0 %423
        %426 = vset.pattern.permute.xlu0 2
        %427 = vperm.xlu0 %426, %v204
        %v428 = vpop.permute.xlu0 %427
        %430 = vset.pattern.permute.xlu0 2
        %431 = vperm.xlu0 %430, %v205
        %v432 = vpop.permute.xlu0 %431
        %434 = vset.pattern.permute.xlu0 2
        %435 = vperm.xlu0 %434, %v206
        %v436 = vpop.permute.xlu0 %435
        %438 = vset.pattern.permute.xlu0 2
        %439 = vperm.xlu0 %438, %v207
        %v440 = vpop.permute.xlu0 %439
        %442 = vset.pattern.permute.xlu0 2
        %443 = vperm.xlu0 %442, %v208
        %v444 = vpop.permute.xlu0 %443
        %446 = vset.pattern.permute.xlu0 2
        %447 = vperm.xlu0 %446, %v209
        %v448 = vpop.permute.xlu0 %447
        %v450 = vlaneseq
        %v451 = vshrl.u32 %v450, 7
        %v452 = vsub.s32 2, %v451
        %v453 = vrot.slane %v200, %v452
        %v454 = vlaneseq
        %v455 = vshrl.u32 %v454, 7
        %v456 = vsub.s32 6, %v455
        %v457 = vrot.slane %v200, %v456
        %v458 = vlaneseq
        %v459 = vshrl.u32 %v458, 7
        %v460 = vsub.s32 2, %v459
        %v461 = vrot.slane %v201, %v460
        %v465 = vlaneseq
        %v466 = vshrl.u32 %v465, 7
        %v467 = vsub.s32 2, %v466
        %v468 = vrot.slane %v453, %v467
        %v469 = vlaneseq
        %v470 = vshrl.u32 %v469, 7
        %v471 = vsub.s32 2, %v470
        %v472 = vrot.slane %v457, %v471
        %v473 = vlaneseq
        %v474 = vshrl.u32 %v473, 7
        %v475 = vsub.s32 2, %v474
        %v476 = vrot.slane %v461, %v475
        %v477 = vmul.f32 %v420, %v468
        %v478 = vmul.f32 %v420, %v472
        %v479 = vmul.f32 %v420, %v476
        %v480 = vmul.f32 %v424, %v468
        %v481 = vmul.f32 %v424, %v472
        %v482 = vmul.f32 %v424, %v476
        %v483 = vmul.f32 %v428, %v468
        %v484 = vmul.f32 %v428, %v472
        %v485 = vmul.f32 %v428, %v476
        %v486 = vmul.f32 %v432, %v468
        %v487 = vmul.f32 %v432, %v472
        %v488 = vmul.f32 %v432, %v476
        %v489 = vmul.f32 %v436, %v468
        %v490 = vmul.f32 %v436, %v472
        %v491 = vmul.f32 %v436, %v476
        %v492 = vmul.f32 %v440, %v468
        %v493 = vmul.f32 %v440, %v472
        %v494 = vmul.f32 %v440, %v476
        %v495 = vmul.f32 %v444, %v468
        %v496 = vmul.f32 %v444, %v472
        %v497 = vmul.f32 %v444, %v476
        %v498 = vmul.f32 %v448, %v468
        %v499 = vmul.f32 %v448, %v472
        %v500 = vmul.f32 %v448, %v476
        %v501 = vadd.f32 %v394, %v477
        %v502 = vadd.f32 %v395, %v478
        %v503 = vadd.f32 %v396, %v479
        %v504 = vadd.f32 %v397, %v480
        %v505 = vadd.f32 %v398, %v481
        %v506 = vadd.f32 %v399, %v482
        %v507 = vadd.f32 %v400, %v483
        %v508 = vadd.f32 %v401, %v484
        %v509 = vadd.f32 %v402, %v485
        %v510 = vadd.f32 %v403, %v486
        %v511 = vadd.f32 %v404, %v487
        %v512 = vadd.f32 %v405, %v488
        %v513 = vadd.f32 %v406, %v489
        %v514 = vadd.f32 %v407, %v490
        %v515 = vadd.f32 %v408, %v491
        %v516 = vadd.f32 %v409, %v492
        %v517 = vadd.f32 %v410, %v493
        %v518 = vadd.f32 %v411, %v494
        %v519 = vadd.f32 %v412, %v495
        %v520 = vadd.f32 %v413, %v496
        %v521 = vadd.f32 %v414, %v497
        %v522 = vadd.f32 %v415, %v498
        %v523 = vadd.f32 %v416, %v499
        %v524 = vadd.f32 %v417, %v500
        %526 = vset.pattern.permute.xlu0 0
        %527 = vperm.xlu0 %526, %v210
        %v528 = vpop.permute.xlu0 %527
        %531 = vset.pattern.permute.xlu0 0
        %532 = vperm.xlu0 %531, %v211
        %v533 = vpop.permute.xlu0 %532
        %536 = vset.pattern.permute.xlu0 0
        %537 = vperm.xlu0 %536, %v212
        %v538 = vpop.permute.xlu0 %537
        %541 = vset.pattern.permute.xlu0 0
        %542 = vperm.xlu0 %541, %v213
        %v543 = vpop.permute.xlu0 %542
        %546 = vset.pattern.permute.xlu0 0
        %547 = vperm.xlu0 %546, %v214
        %v548 = vpop.permute.xlu0 %547
        %551 = vset.pattern.permute.xlu0 0
        %552 = vperm.xlu0 %551, %v215
        %v553 = vpop.permute.xlu0 %552
        %556 = vset.pattern.permute.xlu0 0
        %557 = vperm.xlu0 %556, %v216
        %v558 = vpop.permute.xlu0 %557
        %561 = vset.pattern.permute.xlu0 0
        %562 = vperm.xlu0 %561, %v217
        %v563 = vpop.permute.xlu0 %562
        %v565 = vadd.f32 %v501, %v528
        %v566 = vadd.f32 %v502, %v528
        %v567 = vadd.f32 %v503, %v528
        %v568 = vadd.f32 %v504, %v533
        %v569 = vadd.f32 %v505, %v533
        %v570 = vadd.f32 %v506, %v533
        %v571 = vadd.f32 %v507, %v538
        %v572 = vadd.f32 %v508, %v538
        %v573 = vadd.f32 %v509, %v538
        %v574 = vadd.f32 %v510, %v543
        %v575 = vadd.f32 %v511, %v543
        %v576 = vadd.f32 %v512, %v543
        %v577 = vadd.f32 %v513, %v548
        %v578 = vadd.f32 %v514, %v548
        %v579 = vadd.f32 %v515, %v548
        %v580 = vadd.f32 %v516, %v553
        %v581 = vadd.f32 %v517, %v553
        %v582 = vadd.f32 %v518, %v553
        %v583 = vadd.f32 %v519, %v558
        %v584 = vadd.f32 %v520, %v558
        %v585 = vadd.f32 %v521, %v558
        %v586 = vadd.f32 %v522, %v563
        %v587 = vadd.f32 %v523, %v563
        %v588 = vadd.f32 %v524, %v563
        %v589 = vmax.f32 %v565, 0.0
        %v590 = vmax.f32 %v566, 0.0
        %v591 = vmax.f32 %v567, 0.0
        %v592 = vmax.f32 %v568, 0.0
        %v593 = vmax.f32 %v569, 0.0
        %v594 = vmax.f32 %v570, 0.0
        %v595 = vmax.f32 %v571, 0.0
        %v596 = vmax.f32 %v572, 0.0
        %v597 = vmax.f32 %v573, 0.0
        %v598 = vmax.f32 %v574, 0.0
        %v599 = vmax.f32 %v575, 0.0
        %v600 = vmax.f32 %v576, 0.0
        %v601 = vmax.f32 %v577, 0.0
        %v602 = vmax.f32 %v578, 0.0
        %v603 = vmax.f32 %v579, 0.0
        %v604 = vmax.f32 %v580, 0.0
        %v605 = vmax.f32 %v581, 0.0
        %v606 = vmax.f32 %v582, 0.0
        %v607 = vmax.f32 %v583, 0.0
        %v608 = vmax.f32 %v584, 0.0
        %v609 = vmax.f32 %v585, 0.0
        %v610 = vmax.f32 %v586, 0.0
        %v611 = vmax.f32 %v587, 0.0
        %v612 = vmax.f32 %v588, 0.0
        %613 = vst [vmem:[%s188] sm:$0xff] %v589
        %614 = vst [vmem:[%s188 + $0x8] sm:$0xff] %v590
        %vm615 = vcmask 359424
        %616 = vst.msk [vmem:[%s188 + $0x10] sm:$0xff] %vm615, %v591
        %617 = vst [vmem:[%s188 + $0x18] sm:$0xff] %v592
        %618 = vst [vmem:[%s188 + $0x20] sm:$0xff] %v593
        %619 = vst.msk [vmem:[%s188 + $0x28] sm:$0xff] %vm615, %v594
        %620 = vst [vmem:[%s188 + $0x30] sm:$0xff] %v595
        %621 = vst [vmem:[%s188 + $0x38] sm:$0xff] %v596
        %622 = vst.msk [vmem:[%s188 + $0x40] sm:$0xff] %vm615, %v597
        %623 = vst [vmem:[%s188 + $0x48] sm:$0xff] %v598
        %624 = vst [vmem:[%s188 + $0x50] sm:$0xff] %v599
        %625 = vst.msk [vmem:[%s188 + $0x58] sm:$0xff] %vm615, %v600
        %626 = vst [vmem:[%s188 + $0x60] sm:$0xff] %v601
        %627 = vst [vmem:[%s188 + $0x68] sm:$0xff] %v602
        %628 = vst.msk [vmem:[%s188 + $0x70] sm:$0xff] %vm615, %v603
        %629 = vst [vmem:[%s188 + $0x78] sm:$0xff] %v604
        %630 = vst [vmem:[%s188 + $0x80] sm:$0xff] %v605
        %631 = vst.msk [vmem:[%s188 + $0x88] sm:$0xff] %vm615, %v606
        %632 = vst [vmem:[%s188 + $0x90] sm:$0xff] %v607
        %633 = vst [vmem:[%s188 + $0x98] sm:$0xff] %v608
        %634 = vst.msk [vmem:[%s188 + $0xa0] sm:$0xff] %vm615, %v609
        %635 = vst [vmem:[%s188 + $0xa8] sm:$0xff] %v610
        %636 = vst [vmem:[%s188 + $0xb0] sm:$0xff] %v611
        %637 = vst.msk [vmem:[%s188 + $0xb8] sm:$0xff] %vm615, %v612
        %s638 = sand.u32 %s109, 1
        %s639 = scalar_lea.sflag [#allocation3], %s638
        %s640 = sand.u32 %s109, 1
        %s641 = smul.addr %s640, 192
        %s642 = scalar_lea.vmem [#allocation2], %s641
        // Predicated region
        $region33: #{tpu_custom_call.1} parent=31 // pred_check
          %p643 = pneg %p119
        $region34: #{tpu_custom_call.1} parent=31 // pred_check_branch
          %645 = sbr.rel (%p643) target = $region36
        $region35: #{tpu_custom_call.1} parent=31 // pred_region
          %s646 = smul.u32 3, %s22
          %s648 = ssub.s32 3072, 3072
          %649 = vsyncadd %s639, %s648
          %s650 = smul.addr %s21, 24
          %s651 = sadd.s32 %s646, %s650
          %s652 = smul.addr %s651, 128
          %s653 = scalar_lea.hbm %s3, %s652
          %s654 = sshll.u32 %s642, 4
          %s655 = int_to_ptr.vmem [resolvable:$true] %s654
          %660 = dma.vmem_to_hbm [thread:$0]  %s655, 3072, %s653, %s639, 384, 384, 24
        $region36: #{tpu_custom_call.1} parent=31 // pred_fallthru
          _
      $region32: #{tpu_custom_call.1} parent=5 // pred_fallthru
        _
      %p661 = scmp.le.s32.totalorder 2, %s12
      // Predicated region
      $region37: #{tpu_custom_call.1} parent=5 // pred_check
        %p662 = pneg %p661
      $region38: #{tpu_custom_call.1} parent=5 // pred_check_branch
        %664 = sbr.rel (%p662) target = $region40
      $region39: #{tpu_custom_call.1} parent=5 // pred_region
        %s665 = ssub.s32 %s12, 2
        // Predicated region
        $region41: #{tpu_custom_call.1} parent=39 // pred_check
          %p666 = pneg %p125
        $region42: #{tpu_custom_call.1} parent=39 // pred_check_branch
          %668 = sbr.rel (%p666) target = $region44
        $region43: #{tpu_custom_call.1} parent=39 // pred_region
          %s669 = sand.u32 %s110, 1
          %s670 = scalar_lea.sflag [#allocation3], %s669
          %s671 = sand.u32 %s110, 1
          %s672 = smul.addr %s671, 192
          %s673 = scalar_lea.vmem [#allocation2], %s672
          %674 = dma.done %s670, 3072
        $region44: #{tpu_custom_call.1} parent=39 // pred_fallthru
          _
      $region40: #{tpu_custom_call.1} parent=5 // pred_fallthru
        _
    $region6: #{tpu_custom_call.1} parent=1 // loop_footer
      %s16 = sadd.s32 1, %s12
    $region7: #{tpu_custom_call.1} parent=1 // loop_footer_branch
      %11 = sbr.rel target = $region3
    $region8: #{tpu_custom_call.1} parent=1 // loop_exit
      _
    %675 = vsyncpa [#allocation3], 1
    %s676 = scalar_lea.sflag [#allocation3], 1
    %677 = vsyncpa %s676, 1

</llo_original>
